<compile_context>
chip_gen: v6e
topology: v6e:2x2x1
jax: 0.10.0
libtpu: 0.0.40
codegen_flags: <defaults>
</compile_context>

<pallas_src>
import math

import jax
import jax.numpy as jnp
import numpy as np
from jax.experimental import pallas as pl
from jax.experimental.pallas import tpu as pltpu


def _embed_kernel(xc_ref, w_ref, pe_ref, o_ref):
    """One grid step = one (seq-tile, batch-tile) block.

    xc_ref : (Bt, TL, 3*Cin)   bf16  im2col'd circular-conv patches  (VMEM)
    w_ref  : (3*Cin, d_model)  bf16  flattened conv weight           (VMEM)
    pe_ref : (TL, d_model)     f32   positional-embedding tile       (VMEM)
    o_ref  : (Bt, TL, d_model)       output tile                     (VMEM)
    """
    bt, tl, ck = xc_ref.shape
    d = o_ref.shape[-1]
    acc = jnp.dot(xc_ref[...].reshape(bt * tl, ck), w_ref[...],
                  preferred_element_type=jnp.float32)
    acc = acc.reshape(bt, tl, d) + pe_ref[...]
    o_ref[...] = acc.astype(o_ref.dtype)


def _positional_encoding(L, d_model):
    """PositionalEmbedding.pe[:, :L] (d_model must be even, as in the module)."""
    pos = jnp.arange(L, dtype=jnp.float32)[:, None]
    div = jnp.exp(jnp.arange(0, d_model, 2, dtype=jnp.float32)
                  * (-math.log(10000.0) / d_model))
    ang = pos * div                                    # (L, d_model//2)
    pe = jnp.zeros((L, d_model), dtype=jnp.float32)
    pe = pe.at[:, 0::2].set(jnp.sin(ang))
    pe = pe.at[:, 1::2].set(jnp.cos(ang))
    return pe


def _vmem_budget():
    """Per-step VMEM budget (bytes), generation-aware but conservative."""
    cap = 64 << 20
    try:
        info = pltpu.get_tpu_info()
        cap = getattr(info, "vmem_capacity_bytes", cap)
    except Exception:
        pass
    # Stay well under the scoped-VMEM limit we request (32 MiB) and under
    # physical VMEM on v7x (64 MiB); v5e/v6e (128 MiB) hit the 24 MiB cap.
    return min(cap // 3, 24 << 20)


def _pick_tiles(B, L, Cin, d_model, out_itemsize, vmem_budget):
    """Pick (batch_tile, seq_tile) so double-buffered blocks fit the budget."""
    three_cin = 3 * Cin
    w_bytes = three_cin * d_model * 2                  # bf16 weight (resident)

    def block_bytes(bt, ts):
        xc = bt * ts * three_cin * 2                   # bf16 patches block
        out = bt * ts * d_model * out_itemsize         # output block
        pe = ts * d_model * 4                          # f32 pe tile
        return 2 * (xc + out + pe + w_bytes)           # double-buffered

    cap = min(L, 1024)
    seq_cands = [t for t in range(cap, 0, -1)
                 if L % t == 0 and (t % 8 == 0 or t == L)]
    if not seq_cands:                                  # pathological L
        seq_cands = [t for t in range(cap, 0, -1) if L % t == 0]
    seq_tile = next((t for t in seq_cands if block_bytes(1, t) <= vmem_budget),
                    seq_cands[-1])

    batch_tile = 1
    if seq_tile % 16 == 0:                             # keep the merge-reshape free
        for bt in (4, 3, 2):
            if B % bt == 0 and block_bytes(bt, seq_tile) <= vmem_budget:
                batch_tile = bt
                break
    return batch_tile, seq_tile


def data_embedding_pallas(x, conv_weight, *, seq_tile=None, batch_tile=None,
                          out_dtype=jnp.float32):
    """Forward pass of DataEmbedding (eval mode).

    x           : (B, L, c_in) float32
    conv_weight : (d_model, c_in, 3) float32  (PyTorch Conv1d OIK layout)
    returns     : (B, L, d_model) out_dtype (default f32, matching the module)
    """
    B, L, Cin = x.shape
    d_model, Cin_w, K = conv_weight.shape
    assert Cin_w == Cin and K == 3 and d_model % 2 == 0

    out_itemsize = jnp.dtype(out_dtype).itemsize
    auto_bt, auto_ts = _pick_tiles(B, L, Cin, d_model, out_itemsize,
                                   _vmem_budget())
    if seq_tile is None:
        seq_tile = auto_ts
    if batch_tile is None:
        batch_tile = auto_bt if seq_tile % 16 == 0 else 1
    assert L % seq_tile == 0, "seq_tile must divide L"
    assert B % batch_tile == 0, "batch_tile must divide B"

    # Positional embedding (same for every batch element), kept in f32.
    pe = _positional_encoding(L, d_model)

    # im2col for the circular k=3 conv: x_cat[b, t] = [x[t-1], x[t], x[t+1]].
    x_prev = jnp.roll(x, 1, axis=1)
    x_next = jnp.roll(x, -1, axis=1)
    x_cat = jnp.concatenate([x_prev, x, x_next], axis=-1).astype(jnp.bfloat16)

    # Conv weight (d_model, Cin, 3) -> 2-D lane-dense (3*Cin, d_model);
    # row index k*Cin + c matches the x_cat concatenation order.
    w_flat = jnp.transpose(conv_weight, (2, 1, 0)).reshape(3 * Cin, d_model)
    w_flat = w_flat.astype(jnp.bfloat16)

    # Grid order (seq-tiles, batch-tiles): batch is the INNER axis, so the pe
    # block index (s, 0) is constant across it and each pe tile is DMA'd once
    # per seq tile (not once per grid step).  Both axes are independent.
    grid = (L // seq_tile, B // batch_tile)

    out = pl.pallas_call(
        _embed_kernel,
        out_shape=jax.ShapeDtypeStruct((B, L, d_model), out_dtype),
        grid_spec=pltpu.PrefetchScalarGridSpec(
            num_scalar_prefetch=0,
            grid=grid,
            in_specs=[
                pl.BlockSpec((batch_tile, seq_tile, 3 * Cin),
                             lambda s, b: (b, s, 0)),
                pl.BlockSpec((3 * Cin, d_model), lambda s, b: (0, 0)),
                pl.BlockSpec((seq_tile, d_model), lambda s, b: (s, 0)),
            ],
            out_specs=pl.BlockSpec((batch_tile, seq_tile, d_model),
                                   lambda s, b: (b, s, 0)),
        ),
        compiler_params=pltpu.CompilerParams(
            dimension_semantics=("parallel", "parallel"),
            vmem_limit_bytes=32 << 20),
    )(x_cat, w_flat, pe)

    # Dropout is identity in eval mode (see TODO at top).
    return out


def _reference(x, conv_weight, pe):
    """Pure-JAX f32 reference matching the PyTorch forward exactly."""
    B, L, Cin = x.shape
    idx = (jnp.arange(L)[:, None] + jnp.arange(-1, 2)[None, :]) % L   # (L, 3)
    patches = x[:, idx, :]                                            # (B, L, 3, Cin)
    y = jnp.einsum('blkc,dck->bld', patches, conv_weight)
    return y + pe[None]


if __name__ == "__main__":
    key = jax.random.PRNGKey(0)

    B, L, Cin, d_model = 2, 16, 4, 32

    kx, kw = jax.random.split(key)
    x = jax.random.normal(kx, (B, L, Cin), dtype=jnp.float32)
    # kaiming_normal_(mode='fan_in', nonlinearity='leaky_relu'), bias-free conv
    fan_in = Cin * 3
    std = math.sqrt(2.0 / fan_in)
    conv_w = std * jax.random.normal(kw, (d_model, Cin, 3), dtype=jnp.float32)

    pe = _positional_encoding(L, d_model)

    # References: bf16-rounded operands (tight, isolates kernel math) and the
    # full-precision module semantics (loose, accounts for bf16 MXU operands).
    xq = x.astype(jnp.bfloat16).astype(jnp.float32)
    wq = conv_w.astype(jnp.bfloat16).astype(jnp.float32)
    ref_q = jax.block_until_ready(_reference(xq, wq, pe))
    ref = jax.block_until_ready(_reference(x, conv_w, pe))

    # Run once with auto tiling (single big block) and once with small tiles
    # so the multi-step grid / pe-revisit path is exercised too.
    for kwargs in ({}, {"seq_tile": 8, "batch_tile": 1}):
        out = jax.block_until_ready(data_embedding_pallas(x, conv_w, **kwargs))
        np.testing.assert_allclose(np.asarray(out), np.asarray(ref_q),
                                   rtol=2e-4, atol=2e-4)
        np.testing.assert_allclose(np.asarray(out), np.asarray(ref),
                                   rtol=5e-2, atol=8e-2)

    print("KERNEL_OK")
</pallas_src>

<mosaic_0001>
module attributes {stable_mosaic.version = 11 : i64} {
  func.func @_embed_kernel(%arg0: i32, %arg1: i32, %arg2: memref<2x16x12xbf16, #tpu.memory_space<vmem>>, %arg3: memref<12x32xbf16, #tpu.memory_space<vmem>>, %arg4: memref<16x32xf32, #tpu.memory_space<vmem>>, %arg5: memref<2x16x32xf32, #tpu.memory_space<vmem>>) attributes {dimension_semantics = [#tpu.dimension_semantics<parallel>, #tpu.dimension_semantics<parallel>], iteration_bounds = array<i64: 1, 1>, scalar_prefetch = 0 : i64, scratch_operands = 0 : i64, tpu.core_type = #tpu.core_type<tc>, window_params = [{transform_indices = @transform_0, window_bounds = array<i64: 2, 16, 12>}, {pipeline_mode = #tpu.pipeline_mode<synchronous>, transform_indices = @transform_1, window_bounds = array<i64: 12, 32>}, {transform_indices = @transform_2, window_bounds = array<i64: 16, 32>}, {transform_indices = @transform_3, window_bounds = array<i64: 2, 16, 32>}]} {
    %c0 = arith.constant 0 : index
    %c0_0 = arith.constant 0 : index
    %c0_1 = arith.constant 0 : index
    %0 = vector.load %arg2[%c0, %c0_0, %c0_1] : memref<2x16x12xbf16, #tpu.memory_space<vmem>>, vector<2x16x12xbf16>
    %1 = vector.shape_cast %0 : vector<2x16x12xbf16> to vector<32x12xbf16>
    %c0_2 = arith.constant 0 : index
    %c0_3 = arith.constant 0 : index
    %2 = vector.load %arg3[%c0_2, %c0_3] : memref<12x32xbf16, #tpu.memory_space<vmem>>, vector<12x32xbf16>
    %cst = arith.constant dense<0.000000e+00> : vector<32x32xf32>
    %3 = tpu.matmul %1, %2, %cst {dimension_numbers = #tpu.dot_dimension_numbers<[1], [0], [0], [1], [0, 0, 1, 1], [], []>} : vector<32x12xbf16>, vector<12x32xbf16>, vector<32x32xf32> -> vector<32x32xf32>
    %4 = vector.shape_cast %3 : vector<32x32xf32> to vector<2x16x32xf32>
    %c0_4 = arith.constant 0 : index
    %c0_5 = arith.constant 0 : index
    %5 = vector.load %arg4[%c0_4, %c0_5] : memref<16x32xf32, #tpu.memory_space<vmem>>, vector<16x32xf32>
    %6 = vector.shape_cast %5 : vector<16x32xf32> to vector<1x16x32xf32>
    %7 = vector.broadcast %6 : vector<1x16x32xf32> to vector<2x16x32xf32>
    %8 = arith.addf %4, %7 : vector<2x16x32xf32>
    %c0_6 = arith.constant 0 : index
    %c0_7 = arith.constant 0 : index
    %c0_8 = arith.constant 0 : index
    %9 = vector.load %arg5[%c0_6, %c0_7, %c0_8] : memref<2x16x32xf32, #tpu.memory_space<vmem>>, vector<2x16x32xf32>
    tpu.vector_store %arg5[%c0_6, %c0_7, %c0_8], %8 {strides = array<i32>} : memref<2x16x32xf32, #tpu.memory_space<vmem>>, vector<2x16x32xf32>,
    return
  }
  func.func @transform_0(%arg0: i32, %arg1: i32) -> (i32, i32, i32) {
    %c0_i32 = arith.constant 0 : i32
    %c0_i32_0 = arith.constant 0 : i32
    return %arg1, %arg0, %c0_i32 : i32, i32, i32
  }
  func.func @transform_1(%arg0: i32, %arg1: i32) -> (i32, i32) {
    %c0_i32 = arith.constant 0 : i32
    %c0_i32_0 = arith.constant 0 : i32
    %c0_i32_1 = arith.constant 0 : i32
    return %c0_i32, %c0_i32_0 : i32, i32
  }
  func.func @transform_2(%arg0: i32, %arg1: i32) -> (i32, i32) {
    %c0_i32 = arith.constant 0 : i32
    %c0_i32_0 = arith.constant 0 : i32
    return %arg0, %c0_i32 : i32, i32
  }
  func.func @transform_3(%arg0: i32, %arg1: i32) -> (i32, i32, i32) {
    %c0_i32 = arith.constant 0 : i32
    %c0_i32_0 = arith.constant 0 : i32
    return %arg1, %arg0, %c0_i32 : i32, i32, i32
  }
}

</mosaic_0001>

<llo_original>
// kernel: tpu_custom_call.1
$region0: #{tpu_custom_call.1}
  #allocation0 [shape = 'u32[]', space=smem, size = 0x4, offset = 0x4, fixed_abs, tag = 'smem constant byte address 0x4 - core index']
  #allocation1 [shape = 'u32[144,128]{1,0:T(1,128)}', space=vmem, size = 0x12000, scoped, tag = 'internal scratch']
  %s0 = inlined_call_operand.vmem [shape: bf16[2,16,12], index: 0, kind: input, shape index: {}]
  %s1 = inlined_call_operand.vmem [shape: bf16[12,32], index: 1, kind: input, shape index: {}]
  %s2 = inlined_call_operand.vmem [shape: f32[16,32], index: 2, kind: input, shape index: {}]
  %s3 = inlined_call_operand.hbm [shape: f32[2,16,32], index: 3, kind: output, shape index: {}]
  %s4 = sld [smem:[#allocation0]]
  $region22: #{tpu_custom_call.1} parent=0
    _
  %s6 = ssub.s32 1, %s4
  %s7 = scalar_select 0, %s6, %s4
  $region1: #{tpu_custom_call.1} parent=0
    #allocation2 [shape = 'u8[16384]{0}', space=vmem, size = 0x4000, scoped, tag = 'output window, operand 0, single buffered']
    #allocation3 [shape = 's32[1]{0}', space=sflag, size = 0x4, scoped, tag = 'scoped memory for tpu_custom_call.1']
    %8 = vsyncpa [#allocation3], 0
    // Predicated region
    $region2: #{tpu_custom_call.1} parent=1 // pred_check
      _
    $region3: #{tpu_custom_call.1} parent=1 // pred_check_branch
      %10 = sbr.rel (0) target = $region5
    $region4: #{tpu_custom_call.1} parent=1 // pred_region
      _
    $region5: #{tpu_custom_call.1} parent=1 // pred_fallthru
      _
    // Predicated region
    $region6: #{tpu_custom_call.1} parent=1 // pred_check
      _
    $region7: #{tpu_custom_call.1} parent=1 // pred_check_branch
      %12 = sbr.rel (0) target = $region9
    $region8: #{tpu_custom_call.1} parent=1 // pred_region
      _
    $region9: #{tpu_custom_call.1} parent=1 // pred_fallthru
      _
    // Predicated region
    $region10: #{tpu_custom_call.1} parent=1 // pred_check
      _
    $region11: #{tpu_custom_call.1} parent=1 // pred_check_branch
      %14 = sbr.rel (0) target = $region13
    $region12: #{tpu_custom_call.1} parent=1 // pred_region
      _
    $region13: #{tpu_custom_call.1} parent=1 // pred_fallthru
      _
    %v16 = vld [vmem:[%s0] sm:$0xf]
    %v17 = vld [vmem:[%s0 + $0x4] sm:$0xf]
    %v18 = vld [vmem:[%s0 + $0x8] sm:$0xf]
    %v19 = vld [vmem:[%s0 + $0xc] sm:$0xf]
    %v20 = vld [vmem:[%s1] sm:$0xf]
    %v21 = vld [vmem:[%s1 + $0x4] sm:$0x3]
    %v26 = vunpack.c.l.b16 %v16
    %v27 = vunpack.c.l.b16 %v17
    %v28 = vunpack.c.l.b16 %v18
    %v29 = vunpack.c.l.b16 %v19
    %v30 = vpack.c.b16 %v27, %v26
    %v31 = vpack.c.b16 %v29, %v28
    %v34 = vunpack.c.l.b16 %v20
    %v35 = vunpack.c.l.b16 %v21
    %v36 = vpack.c.b16 %v35, %v34
    %vm37 = vcmask 97280
    %v39 = vsel %vm37, %v30, 0
    %v42 = vsel %vm37, %v31, 0
    %vm44 = vcmask 1045504
    %v46 = vsel %vm44, %v36, 0
    %48 = vmatprep.subr.bf16.mxu0 0
    %49 = vmatpush1.bf16.msra.mxu0 0
    %50 = vmatprep.subr.bf16.mxu0 0
    %51 = vmatpush1.bf16.msra.mxu0 0
    %52 = vmatprep.subr.bf16.mxu0 0
    %53 = vmatpush1.bf16.msra.mxu0 0
    %54 = vmatprep.subr.bf16.mxu0 0
    %55 = vmatpush1.bf16.msra.mxu0 0
    %56 = vmatprep.subr.bf16.mxu0 0
    %57 = vmatpush1.bf16.msra.mxu0 0
    %58 = vmatprep.subr.bf16.mxu0 0
    %59 = vmatpush1.bf16.msra.mxu0 0
    %60 = vmatprep.subr.bf16.mxu0 0
    %61 = vmatpush1.bf16.msra.mxu0 0
    %62 = vmatprep.subr.bf16.mxu0 0
    %63 = vmatpush1.bf16.msra.mxu0 %v46
    %64 = vmatprep.subr.bf16.mxu0 0
    %65 = vmatpush2.bf16.msra.mxu0 0
    %66 = vmatprep.subr.bf16.mxu0 0
    %67 = vmatpush2.bf16.msra.mxu0 0
    %68 = vmatprep.subr.bf16.mxu0 0
    %69 = vmatpush2.bf16.msra.mxu0 0
    %70 = vmatprep.subr.bf16.mxu0 0
    %71 = vmatpush2.bf16.msra.mxu0 0
    %72 = vmatprep.subr.bf16.mxu0 0
    %73 = vmatpush2.bf16.msra.mxu0 0
    %74 = vmatprep.subr.bf16.mxu0 0
    %75 = vmatpush2.bf16.msra.mxu0 0
    %76 = vmatprep.subr.bf16.mxu0 0
    %77 = vmatpush2.bf16.msra.mxu0 0
    %78 = vmatprep.subr.bf16.mxu0 0
    %79 = vmatpush2.bf16.msra.mxu0 0
    %80 = vmatprep.mubr.bf16.mxu0 0
    %81 = vmatmul.mubr.bf16.gmra.mxu0 %v39
    %v82 = vpop.f32.mrf.mxu0
    %v83 = vadd.f32 0.0, %v82
    %v84 = vpop.f32.mrf.mxu0
    %v85 = vpop.f32.mrf.mxu0
    %v86 = vadd.f32 0.0, %v85
    %v87 = vpop.f32.mrf.mxu0
    %88 = vmatprep.mubr.bf16.mxu0 0
    %89 = vmatmul.mubr.bf16.gmra.mxu0 %v42
    %v90 = vpop.f32.mrf.mxu0
    %v91 = vadd.f32 0.0, %v90
    %v92 = vpop.f32.mrf.mxu0
    %v93 = vpop.f32.mrf.mxu0
    %v94 = vadd.f32 0.0, %v93
    %v95 = vpop.f32.mrf.mxu0
    %96 = vdwg.mxu0
    %v97 = vld [vmem:[%s2] sm:$0xff]
    %v98 = vld [vmem:[%s2 + $0x8] sm:$0xff]
    %v99 = vadd.f32 %v83, %v97
    %v100 = vadd.f32 %v86, %v98
    %v101 = vadd.f32 %v91, %v97
    %v102 = vadd.f32 %v94, %v98
    %vm103 = vcmask 261120
    %104 = vst.msk [vmem:[#allocation2] sm:$0xff] %vm103, %v99
    %105 = vst.msk [vmem:[#allocation2 + $0x8] sm:$0xff] %vm103, %v100
    %106 = vst.msk [vmem:[#allocation2 + $0x10] sm:$0xff] %vm103, %v101
    %107 = vst.msk [vmem:[#allocation2 + $0x18] sm:$0xff] %vm103, %v102
    // Predicated region
    $region14: #{tpu_custom_call.1} parent=1 // pred_check
      _
    $region15: #{tpu_custom_call.1} parent=1 // pred_check_branch
      %109 = sbr.rel (0) target = $region17
    $region16: #{tpu_custom_call.1} parent=1 // pred_region
      %s111 = ssub.s32 512, 512
      %112 = vsyncadd [#allocation3], %s111
      %s113 = sshll.u32 [#allocation2], 4
      %s114 = int_to_ptr.vmem [resolvable:$true] %s113
      %119 = dma.vmem_to_hbm [thread:$0]  %s114, 512, %s3, [#allocation3], 128, 128, 8
    $region17: #{tpu_custom_call.1} parent=1 // pred_fallthru
      _
    // Predicated region
    $region18: #{tpu_custom_call.1} parent=1 // pred_check
      _
    $region19: #{tpu_custom_call.1} parent=1 // pred_check_branch
      %121 = sbr.rel (0) target = $region21
    $region20: #{tpu_custom_call.1} parent=1 // pred_region
      %122 = dma.done [#allocation3], 512
    $region21: #{tpu_custom_call.1} parent=1 // pred_fallthru
      _
    %123 = vsyncpa [#allocation3], 1

</llo_original>
